<compile_context>
chip_gen: v7x
topology: tpu7x:2x2x1
jax: 0.10.0
libtpu: 0.0.40
codegen_flags: <defaults>
</compile_context>

<pallas_src>
import functools

import jax
import jax.numpy as jnp
from jax.experimental import pallas as pl
from jax.experimental.pallas import tpu as pltpu


def _gcn_fused_kernel(x_ref, adj_ref,
                      w1_ref, b1_ref, w2_ref, b2_ref, w3_ref, b3_ref,
                      *rest, mxu_dtype, with_dropout):
    """Whole 3-layer GCN forward; every operand is a single resident VMEM block."""
    if with_dropout:
        m1_ref, m2_ref, x11_ref, x22_ref, x3_ref = rest
    else:
        m1_ref = m2_ref = None
        x11_ref, x22_ref, x3_ref = rest

    f32 = jnp.float32
    adj = adj_ref[...]  # already in mxu_dtype (pre-cast once in the wrapper)

    def layer(v, w_ref, b_ref, relu):
        # support = v @ W      (MXU, f32 accumulation)
        support = jnp.dot(v, w_ref[...], preferred_element_type=f32)
        # out = adj @ support  (MXU, f32 accumulation); bias/relu stay f32.
        out = jnp.dot(adj, support.astype(mxu_dtype), preferred_element_type=f32)
        out = out + b_ref[...]
        if relu:
            out = jnp.maximum(out, f32(0.0))
        return out

    x11 = layer(x_ref[...], w1_ref, b1_ref, relu=True)           # f32
    x11_ref[...] = x11.astype(x11_ref.dtype)

    h1 = x11 * m1_ref[...] if with_dropout else x11               # mask holds 1/(1-p)
    x22 = layer(h1.astype(mxu_dtype), w2_ref, b2_ref, relu=False)
    x22_ref[...] = x22.astype(x22_ref.dtype)

    h2 = x22 * m2_ref[...] if with_dropout else x22
    x3 = layer(h2.astype(mxu_dtype), w3_ref, b3_ref, relu=False)
    x3_ref[...] = x3.astype(x3_ref.dtype)


def _dropout_masks(key, p, n, h):
    """Pre-scaled keep masks: values in {0, 1/(1-p)}; kernel dropout = one mul."""
    k1, k2 = jax.random.split(key)
    scale = jnp.float32(1.0 / (1.0 - p))
    m1 = jax.random.bernoulli(k1, 1.0 - p, (n, h)).astype(jnp.float32) * scale
    m2 = jax.random.bernoulli(k2, 1.0 - p, (n, h)).astype(jnp.float32) * scale
    return m1, m2


def gcn_forward(x, adj, params, *, dropout_p=0.0, dropout_key=None,
                mxu_dtype=jnp.bfloat16):
    """Fused GCN forward; returns (x11, x22, x3) like the PyTorch module (f32)."""
    (w1, b1), (w2, b2), (w3, b3) = params
    n, fin = x.shape
    hidden = w1.shape[1]

    # Pre-cast MXU operands once (HBM-resident in mxu_dtype). Biases stay f32
    # and are added after the f32 MXU accumulation.
    x_m = x.astype(mxu_dtype)
    adj_m = adj.astype(mxu_dtype)
    w1_m, w2_m, w3_m = (w.astype(mxu_dtype) for w in (w1, w2, w3))
    b1_f, b2_f, b3_f = (b.astype(jnp.float32).reshape(1, -1) for b in (b1, b2, b3))

    with_dropout = float(dropout_p) > 0.0
    args = [x_m, adj_m, w1_m, b1_f, w2_m, b2_f, w3_m, b3_f]
    if with_dropout:
        if dropout_key is None:
            dropout_key = jax.random.PRNGKey(0)
        m1, m2 = _dropout_masks(dropout_key, float(dropout_p), n, hidden)
        args += [m1, m2]

    kernel = functools.partial(_gcn_fused_kernel,
                               mxu_dtype=mxu_dtype,
                               with_dropout=with_dropout)

    vmem = pl.BlockSpec(memory_space=pltpu.MemorySpace.VMEM)
    out_sds = jax.ShapeDtypeStruct((n, hidden), jnp.float32)

    flops = (2 * n * fin * hidden            # x @ W1
             + 2 * 2 * n * hidden * hidden   # h @ W2, h @ W3
             + 3 * 2 * n * n * hidden)       # adj @ support, 3 layers
    bytes_accessed = (sum(int(a.size) * a.dtype.itemsize for a in args)
                      + 3 * n * hidden * 4)

    return pl.pallas_call(
        kernel,
        out_shape=(out_sds, out_sds, out_sds),
        in_specs=[vmem] * len(args),
        out_specs=(vmem, vmem, vmem),
        cost_estimate=pl.CostEstimate(flops=flops, transcendentals=0,
                                      bytes_accessed=bytes_accessed),
        compiler_params=pltpu.CompilerParams(vmem_limit_bytes=32 * 1024 * 1024),
    )(*args)


def init_gc_params(key, fin, fout):
    """Mirrors GraphConvolution.reset_parameters: uniform(-stdv, stdv), stdv=1/sqrt(fout)."""
    kw, kb = jax.random.split(key)
    stdv = 1.0 / float(fout) ** 0.5
    w = jax.random.uniform(kw, (fin, fout), jnp.float32, -stdv, stdv)
    b = jax.random.uniform(kb, (1, fout), jnp.float32, -stdv, stdv)
    return w, b


if __name__ == "__main__":
    key = jax.random.PRNGKey(0)
    k_x, k_adj, k_p1, k_p2, k_p3, k_drop = jax.random.split(key, 6)

    n_nodes = 128
    nfeat = 32       # gc1 input features
    hidden = 128
    dropout_p = 0.5

    x = jax.random.normal(k_x, (n_nodes, nfeat), jnp.float32)

    # Symmetric row-normalized adjacency with self-loops (typical GCN input).
    a = (jax.random.uniform(k_adj, (n_nodes, n_nodes)) < 0.1).astype(jnp.float32)
    a = jnp.maximum(a, a.T) + jnp.eye(n_nodes, dtype=jnp.float32)
    adj = a / jnp.sum(a, axis=1, keepdims=True)

    params = (
        init_gc_params(k_p1, nfeat, hidden),
        init_gc_params(k_p2, hidden, hidden),
        init_gc_params(k_p3, hidden, hidden),
    )

    # Plain-JAX reference of the same math (f32), optionally with given masks.
    def ref_forward(m1=None, m2=None):
        (w1, b1), (w2, b2), (w3, b3) = params
        r11 = jnp.maximum(adj @ (x @ w1) + b1, 0.0)
        h1 = r11 if m1 is None else r11 * m1
        r22 = adj @ (h1 @ w2) + b2
        h2 = r22 if m2 is None else r22 * m2
        r3 = adj @ (h2 @ w3) + b3
        return r11, r22, r3

    r11, r22, r3 = ref_forward()

    # 1) f32 MXU path, no dropout: matches the f32 reference tightly.
    o11, o22, o3 = gcn_forward(x, adj, params, dropout_p=0.0,
                               mxu_dtype=jnp.float32)
    jax.block_until_ready((o11, o22, o3))
    assert jnp.allclose(o11, r11, atol=1e-4), "f32 x11 mismatch"
    assert jnp.allclose(o22, r22, atol=1e-4), "f32 x22 mismatch"
    assert jnp.allclose(o3, r3, atol=1e-4), "f32 x3 mismatch"

    # 2) Default bf16 MXU path (v5e/v6e/v7x fast path), no dropout.
    b11, b22, b3_ = gcn_forward(x, adj, params, dropout_p=0.0)
    jax.block_until_ready((b11, b22, b3_))
    assert jnp.allclose(b11, r11, rtol=3e-2, atol=3e-2), "bf16 x11 mismatch"
    assert jnp.allclose(b22, r22, rtol=3e-2, atol=3e-2), "bf16 x22 mismatch"
    assert jnp.allclose(b3_, r3, rtol=3e-2, atol=3e-2), "bf16 x3 mismatch"

    # 3) Dropout path (f32 MXU): masks are generated in the wrapper from k_drop,
    #    so the reference with the same masks must match exactly-ish.
    m1, m2 = _dropout_masks(k_drop, dropout_p, n_nodes, hidden)
    dr11, dr22, dr3 = ref_forward(m1, m2)
    d11, d22, d3 = gcn_forward(x, adj, params, dropout_p=dropout_p,
                               dropout_key=k_drop, mxu_dtype=jnp.float32)
    jax.block_until_ready((d11, d22, d3))
    assert jnp.allclose(d11, dr11, atol=1e-4), "dropout x11 mismatch"
    assert jnp.allclose(d22, dr22, atol=1e-4), "dropout x22 mismatch"
    assert jnp.allclose(d3, dr3, atol=1e-4), "dropout x3 mismatch"

    print("KERNEL_OK")
</pallas_src>

<mosaic_0001>
module attributes {stable_mosaic.version = 11 : i64} {
  func.func @_gcn_fused_kernel(%arg0: memref<128x32xf32, #tpu.memory_space<vmem>>, %arg1: memref<128x128xf32, #tpu.memory_space<vmem>>, %arg2: memref<32x128xf32, #tpu.memory_space<vmem>>, %arg3: memref<1x128xf32, #tpu.memory_space<vmem>>, %arg4: memref<128x128xf32, #tpu.memory_space<vmem>>, %arg5: memref<1x128xf32, #tpu.memory_space<vmem>>, %arg6: memref<128x128xf32, #tpu.memory_space<vmem>>, %arg7: memref<1x128xf32, #tpu.memory_space<vmem>>, %arg8: memref<128x128xf32, #tpu.memory_space<vmem>>, %arg9: memref<128x128xf32, #tpu.memory_space<vmem>>, %arg10: memref<128x128xf32, #tpu.memory_space<vmem>>) attributes {dimension_semantics = [], scalar_prefetch = 0 : i64, scratch_operands = 0 : i64, tpu.core_type = #tpu.core_type<tc>} {
    %c0 = arith.constant 0 : index
    %c0_0 = arith.constant 0 : index
    %0 = vector.load %arg1[%c0, %c0_0] : memref<128x128xf32, #tpu.memory_space<vmem>>, vector<128x128xf32>
    %c0_1 = arith.constant 0 : index
    %c0_2 = arith.constant 0 : index
    %1 = vector.load %arg0[%c0_1, %c0_2] : memref<128x32xf32, #tpu.memory_space<vmem>>, vector<128x32xf32>
    %c0_3 = arith.constant 0 : index
    %c0_4 = arith.constant 0 : index
    %2 = vector.load %arg2[%c0_3, %c0_4] : memref<32x128xf32, #tpu.memory_space<vmem>>, vector<32x128xf32>
    %cst = arith.constant dense<0.000000e+00> : vector<128x128xf32>
    %3 = tpu.matmul %1, %2, %cst {dimension_numbers = #tpu.dot_dimension_numbers<[1], [0], [0], [1], [0, 0, 1, 1], [], []>} : vector<128x32xf32>, vector<32x128xf32>, vector<128x128xf32> -> vector<128x128xf32>
    %cst_5 = arith.constant dense<0.000000e+00> : vector<128x128xf32>
    %4 = tpu.matmul %0, %3, %cst_5 {dimension_numbers = #tpu.dot_dimension_numbers<[1], [0], [0], [1], [0, 0, 1, 1], [], []>} : vector<128x128xf32>, vector<128x128xf32>, vector<128x128xf32> -> vector<128x128xf32>
    %c0_6 = arith.constant 0 : index
    %c0_7 = arith.constant 0 : index
    %5 = vector.load %arg3[%c0_6, %c0_7] : memref<1x128xf32, #tpu.memory_space<vmem>>, vector<1x128xf32>
    %6 = vector.broadcast %5 : vector<1x128xf32> to vector<128x128xf32>
    %7 = arith.addf %4, %6 : vector<128x128xf32>
    %cst_8 = arith.constant 0.000000e+00 : f32
    %8 = vector.broadcast %cst_8 : f32 to vector<128x128xf32>
    %9 = arith.maximumf %7, %8 : vector<128x128xf32>
    %c0_9 = arith.constant 0 : index
    %c0_10 = arith.constant 0 : index
    %10 = vector.load %arg8[%c0_9, %c0_10] : memref<128x128xf32, #tpu.memory_space<vmem>>, vector<128x128xf32>
    tpu.vector_store %arg8[%c0_9, %c0_10], %9 {strides = array<i32>} : memref<128x128xf32, #tpu.memory_space<vmem>>, vector<128x128xf32>,
    %c0_11 = arith.constant 0 : index
    %c0_12 = arith.constant 0 : index
    %11 = vector.load %arg4[%c0_11, %c0_12] : memref<128x128xf32, #tpu.memory_space<vmem>>, vector<128x128xf32>
    %cst_13 = arith.constant dense<0.000000e+00> : vector<128x128xf32>
    %12 = tpu.matmul %9, %11, %cst_13 {dimension_numbers = #tpu.dot_dimension_numbers<[1], [0], [0], [1], [0, 0, 1, 1], [], []>} : vector<128x128xf32>, vector<128x128xf32>, vector<128x128xf32> -> vector<128x128xf32>
    %cst_14 = arith.constant dense<0.000000e+00> : vector<128x128xf32>
    %13 = tpu.matmul %0, %12, %cst_14 {dimension_numbers = #tpu.dot_dimension_numbers<[1], [0], [0], [1], [0, 0, 1, 1], [], []>} : vector<128x128xf32>, vector<128x128xf32>, vector<128x128xf32> -> vector<128x128xf32>
    %c0_15 = arith.constant 0 : index
    %c0_16 = arith.constant 0 : index
    %14 = vector.load %arg5[%c0_15, %c0_16] : memref<1x128xf32, #tpu.memory_space<vmem>>, vector<1x128xf32>
    %15 = vector.broadcast %14 : vector<1x128xf32> to vector<128x128xf32>
    %16 = arith.addf %13, %15 : vector<128x128xf32>
    %c0_17 = arith.constant 0 : index
    %c0_18 = arith.constant 0 : index
    %17 = vector.load %arg9[%c0_17, %c0_18] : memref<128x128xf32, #tpu.memory_space<vmem>>, vector<128x128xf32>
    tpu.vector_store %arg9[%c0_17, %c0_18], %16 {strides = array<i32>} : memref<128x128xf32, #tpu.memory_space<vmem>>, vector<128x128xf32>,
    %c0_19 = arith.constant 0 : index
    %c0_20 = arith.constant 0 : index
    %18 = vector.load %arg6[%c0_19, %c0_20] : memref<128x128xf32, #tpu.memory_space<vmem>>, vector<128x128xf32>
    %cst_21 = arith.constant dense<0.000000e+00> : vector<128x128xf32>
    %19 = tpu.matmul %16, %18, %cst_21 {dimension_numbers = #tpu.dot_dimension_numbers<[1], [0], [0], [1], [0, 0, 1, 1], [], []>} : vector<128x128xf32>, vector<128x128xf32>, vector<128x128xf32> -> vector<128x128xf32>
    %cst_22 = arith.constant dense<0.000000e+00> : vector<128x128xf32>
    %20 = tpu.matmul %0, %19, %cst_22 {dimension_numbers = #tpu.dot_dimension_numbers<[1], [0], [0], [1], [0, 0, 1, 1], [], []>} : vector<128x128xf32>, vector<128x128xf32>, vector<128x128xf32> -> vector<128x128xf32>
    %c0_23 = arith.constant 0 : index
    %c0_24 = arith.constant 0 : index
    %21 = vector.load %arg7[%c0_23, %c0_24] : memref<1x128xf32, #tpu.memory_space<vmem>>, vector<1x128xf32>
    %22 = vector.broadcast %21 : vector<1x128xf32> to vector<128x128xf32>
    %23 = arith.addf %20, %22 : vector<128x128xf32>
    %c0_25 = arith.constant 0 : index
    %c0_26 = arith.constant 0 : index
    %24 = vector.load %arg10[%c0_25, %c0_26] : memref<128x128xf32, #tpu.memory_space<vmem>>, vector<128x128xf32>
    tpu.vector_store %arg10[%c0_25, %c0_26], %23 {strides = array<i32>} : memref<128x128xf32, #tpu.memory_space<vmem>>, vector<128x128xf32>,
    return
  }
}

</mosaic_0001>

<llo_original>
// kernel: tpu_custom_call.1
$region0: #{tpu_custom_call.1}
  #allocation0 [shape = 'u32[]', space=smem, size = 0x4, offset = 0x4, fixed_abs, tag = 'smem constant byte address 0x4 - core index']
  #allocation1 [shape = 'u32[144,128]{1,0:T(1,128)}', space=vmem, size = 0x12000, scoped, tag = 'internal scratch']
  %s0 = inlined_call_operand.vmem [shape: f32[128,32], index: 0, kind: input, shape index: {}]
  %s1 = inlined_call_operand.vmem [shape: f32[128,128], index: 1, kind: input, shape index: {}]
  %s2 = inlined_call_operand.vmem [shape: f32[32,128], index: 2, kind: input, shape index: {}]
  %s3 = inlined_call_operand.vmem [shape: f32[1,128], index: 3, kind: input, shape index: {}]
  %s4 = inlined_call_operand.hbm [shape: f32[128,128], index: 4, kind: input, shape index: {}]
  %s5 = inlined_call_operand.vmem [shape: f32[1,128], index: 5, kind: input, shape index: {}]
  %s6 = inlined_call_operand.hbm [shape: f32[128,128], index: 6, kind: input, shape index: {}]
  %s7 = inlined_call_operand.vmem [shape: f32[1,128], index: 7, kind: input, shape index: {}]
  %s8 = inlined_call_operand.hbm [shape: f32[128,128], index: 8, kind: output, shape index: {0}]
  %s9 = inlined_call_operand.hbm [shape: f32[128,128], index: 9, kind: output, shape index: {1}]
  %s10 = inlined_call_operand.hbm [shape: f32[128,128], index: 10, kind: output, shape index: {2}]
  %11 = xla_tuple %s8, %s9, %s10
  %s12 = sld [smem:[#allocation0]]
  $region66: #{tpu_custom_call.1} parent=0
    _
  %s14 = ssub.s32 1, %s12
  %s15 = scalar_select 0, %s14, %s12
  $region1: #{tpu_custom_call.1} parent=0
    #allocation2 [shape = 'u8[65536]{0}', space=vmem, size = 0x10000, scoped, tag = 'input window, operand 4, single buffered']
    #allocation3 [shape = 's32[1]{0}', space=sflag, size = 0x4, scoped, tag = 'scoped memory for tpu_custom_call.1']
    #allocation4 [shape = 's32[1]{0}', space=sflag, size = 0x4, scoped, tag = 'scoped memory for tpu_custom_call.1']
    #allocation5 [shape = 'u8[65536]{0}', space=vmem, size = 0x10000, scoped, tag = 'input window, operand 6, single buffered']
    #allocation6 [shape = 's32[1]{0}', space=sflag, size = 0x4, scoped, tag = 'scoped memory for tpu_custom_call.1']
    #allocation7 [shape = 'u8[65536]{0}', space=vmem, size = 0x10000, scoped, tag = 'output window, operand 0, single buffered']
    #allocation8 [shape = 'u8[65536]{0}', space=vmem, size = 0x10000, scoped, tag = 'output window, operand 1, single buffered']
    #allocation9 [shape = 's32[1]{0}', space=sflag, size = 0x4, scoped, tag = 'scoped memory for tpu_custom_call.1']
    #allocation10 [shape = 'u8[65536]{0}', space=vmem, size = 0x10000, scoped, tag = 'output window, operand 2, single buffered']
    %16 = vsyncpa [#allocation3], 0
    %17 = vsyncpa [#allocation6], 0
    %18 = vsyncpa [#allocation4], 0
    %19 = vsyncpa [#allocation9], 0
    // Predicated region
    $region2: #{tpu_custom_call.1} parent=1 // pred_check
      _
    $region3: #{tpu_custom_call.1} parent=1 // pred_check_branch
      %21 = sbr.rel (0) target = $region5
    $region4: #{tpu_custom_call.1} parent=1 // pred_region
      _
    $region5: #{tpu_custom_call.1} parent=1 // pred_fallthru
      _
    // Predicated region
    $region6: #{tpu_custom_call.1} parent=1 // pred_check
      _
    $region7: #{tpu_custom_call.1} parent=1 // pred_check_branch
      %23 = sbr.rel (0) target = $region9
    $region8: #{tpu_custom_call.1} parent=1 // pred_region
      _
    $region9: #{tpu_custom_call.1} parent=1 // pred_fallthru
      _
    // Predicated region
    $region10: #{tpu_custom_call.1} parent=1 // pred_check
      _
    $region11: #{tpu_custom_call.1} parent=1 // pred_check_branch
      %25 = sbr.rel (0) target = $region13
    $region12: #{tpu_custom_call.1} parent=1 // pred_region
      _
    $region13: #{tpu_custom_call.1} parent=1 // pred_fallthru
      _
    // Predicated region
    $region14: #{tpu_custom_call.1} parent=1 // pred_check
      _
    $region15: #{tpu_custom_call.1} parent=1 // pred_check_branch
      %27 = sbr.rel (0) target = $region17
    $region16: #{tpu_custom_call.1} parent=1 // pred_region
      _
    $region17: #{tpu_custom_call.1} parent=1 // pred_fallthru
      _
    // Predicated region
    $region18: #{tpu_custom_call.1} parent=1 // pred_check
      _
    $region19: #{tpu_custom_call.1} parent=1 // pred_check_branch
      %29 = sbr.rel (0) target = $region21
    $region20: #{tpu_custom_call.1} parent=1 // pred_region
      %s31 = ssub.s32 2048, 2048
      %32 = vsyncadd [#allocation3], %s31
      %s33 = sshll.u32 [#allocation2], 4
      %s34 = int_to_ptr.vmem [resolvable:$true] %s33
      %39 = dma.hbm_to_vmem [thread:$0]  %s4, 2048, %s34, [#allocation3], 128, 128, 8
    $region21: #{tpu_custom_call.1} parent=1 // pred_fallthru
      _
    // Predicated region
    $region22: #{tpu_custom_call.1} parent=1 // pred_check
      _
    $region23: #{tpu_custom_call.1} parent=1 // pred_check_branch
      %41 = sbr.rel (0) target = $region25
    $region24: #{tpu_custom_call.1} parent=1 // pred_region
      _
    $region25: #{tpu_custom_call.1} parent=1 // pred_fallthru
      _
    // Predicated region
    $region26: #{tpu_custom_call.1} parent=1 // pred_check
      _
    $region27: #{tpu_custom_call.1} parent=1 // pred_check_branch
      %43 = sbr.rel (0) target = $region29
    $region28: #{tpu_custom_call.1} parent=1 // pred_region
      %s45 = ssub.s32 2048, 2048
      %46 = vsyncadd [#allocation6], %s45
      %s47 = sshll.u32 [#allocation5], 4
      %s48 = int_to_ptr.vmem [resolvable:$true] %s47
      %53 = dma.hbm_to_vmem [thread:$0]  %s6, 2048, %s48, [#allocation6], 128, 128, 8
    $region29: #{tpu_custom_call.1} parent=1 // pred_fallthru
      _
    // Predicated region
    $region30: #{tpu_custom_call.1} parent=1 // pred_check
      _
    $region31: #{tpu_custom_call.1} parent=1 // pred_check_branch
      %55 = sbr.rel (0) target = $region33
    $region32: #{tpu_custom_call.1} parent=1 // pred_region
      _
    $region33: #{tpu_custom_call.1} parent=1 // pred_fallthru
      _
    // Predicated region
    $region34: #{tpu_custom_call.1} parent=1 // pred_check
      _
    $region35: #{tpu_custom_call.1} parent=1 // pred_check_branch
      %57 = sbr.rel (0) target = $region37
    $region36: #{tpu_custom_call.1} parent=1 // pred_region
      %58 = dma.done [#allocation3], 2048
    $region37: #{tpu_custom_call.1} parent=1 // pred_fallthru
      _
    // Predicated region
    $region38: #{tpu_custom_call.1} parent=1 // pred_check
      _
    $region39: #{tpu_custom_call.1} parent=1 // pred_check_branch
      %60 = sbr.rel (0) target = $region41
    $region40: #{tpu_custom_call.1} parent=1 // pred_region
      %61 = dma.done [#allocation6], 2048
    $region41: #{tpu_custom_call.1} parent=1 // pred_fallthru
      _
    %v62 = vld [vmem:[%s1] sm:$0xff]
    %v63 = vld [vmem:[%s1 + $0x8] sm:$0xff]
    %v64 = vld [vmem:[%s1 + $0x10] sm:$0xff]
    %v65 = vld [vmem:[%s1 + $0x18] sm:$0xff]
    %v66 = vld [vmem:[%s1 + $0x20] sm:$0xff]
    %v67 = vld [vmem:[%s1 + $0x28] sm:$0xff]
    %v68 = vld [vmem:[%s1 + $0x30] sm:$0xff]
    %v69 = vld [vmem:[%s1 + $0x38] sm:$0xff]
    %v70 = vld [vmem:[%s1 + $0x40] sm:$0xff]
    %v71 = vld [vmem:[%s1 + $0x48] sm:$0xff]
    %v72 = vld [vmem:[%s1 + $0x50] sm:$0xff]
    %v73 = vld [vmem:[%s1 + $0x58] sm:$0xff]
    %v74 = vld [vmem:[%s1 + $0x60] sm:$0xff]
    %v75 = vld [vmem:[%s1 + $0x68] sm:$0xff]
    %v76 = vld [vmem:[%s1 + $0x70] sm:$0xff]
    %v77 = vld [vmem:[%s1 + $0x78] sm:$0xff]
    %v78 = vld [vmem:[%s0] sm:$0xff]
    %v79 = vld [vmem:[%s0 + $0x8] sm:$0xff]
    %v80 = vld [vmem:[%s0 + $0x10] sm:$0xff]
    %v81 = vld [vmem:[%s0 + $0x18] sm:$0xff]
    %v82 = vld [vmem:[%s0 + $0x20] sm:$0xff]
    %v83 = vld [vmem:[%s0 + $0x28] sm:$0xff]
    %v84 = vld [vmem:[%s0 + $0x30] sm:$0xff]
    %v85 = vld [vmem:[%s0 + $0x38] sm:$0xff]
    %v86 = vld [vmem:[%s0 + $0x40] sm:$0xff]
    %v87 = vld [vmem:[%s0 + $0x48] sm:$0xff]
    %v88 = vld [vmem:[%s0 + $0x50] sm:$0xff]
    %v89 = vld [vmem:[%s0 + $0x58] sm:$0xff]
    %v90 = vld [vmem:[%s0 + $0x60] sm:$0xff]
    %v91 = vld [vmem:[%s0 + $0x68] sm:$0xff]
    %v92 = vld [vmem:[%s0 + $0x70] sm:$0xff]
    %v93 = vld [vmem:[%s0 + $0x78] sm:$0xff]
    %v94 = vld [vmem:[%s2] sm:$0xff]
    %v95 = vld [vmem:[%s2 + $0x8] sm:$0xff]
    %v96 = vld [vmem:[%s2 + $0x10] sm:$0xff]
    %v97 = vld [vmem:[%s2 + $0x18] sm:$0xff]
    %vm98 = vcmask 261120
    %v100 = vsel %vm98, %v78, 0
    %v103 = vsel %vm98, %v79, 0
    %v106 = vsel %vm98, %v80, 0
    %v109 = vsel %vm98, %v81, 0
    %v112 = vsel %vm98, %v82, 0
    %v115 = vsel %vm98, %v83, 0
    %v118 = vsel %vm98, %v84, 0
    %v121 = vsel %vm98, %v85, 0
    %v124 = vsel %vm98, %v86, 0
    %v127 = vsel %vm98, %v87, 0
    %v130 = vsel %vm98, %v88, 0
    %v133 = vsel %vm98, %v89, 0
    %v136 = vsel %vm98, %v90, 0
    %v139 = vsel %vm98, %v91, 0
    %v142 = vsel %vm98, %v92, 0
    %v145 = vsel %vm98, %v93, 0
    %147 = vmatprep.subr.mxu0 0.0
    %148 = vmatpush1.msra.mxu0 %v94
    %149 = vmatprep.subr.mxu0 0.0
    %150 = vmatpush1.msra.mxu0 %v95
    %151 = vmatprep.subr.mxu0 0.0
    %152 = vmatpush1.msra.mxu0 %v96
    %153 = vmatprep.subr.mxu0 0.0
    %154 = vmatpush1.msra.mxu0 %v97
    %155 = vmatprep.subr.mxu0 0.0
    %156 = vmatpush1.msra.mxu0 0.0
    %157 = vmatprep.subr.mxu0 0.0
    %158 = vmatpush1.msra.mxu0 0.0
    %159 = vmatprep.subr.mxu0 0.0
    %160 = vmatpush1.msra.mxu0 0.0
    %161 = vmatprep.subr.mxu0 0.0
    %162 = vmatpush1.msra.mxu0 0.0
    %163 = vmatprep.subr.mxu0 0.0
    %164 = vmatpush1.msra.mxu0 0.0
    %165 = vmatprep.subr.mxu0 0.0
    %166 = vmatpush1.msra.mxu0 0.0
    %167 = vmatprep.subr.mxu0 0.0
    %168 = vmatpush1.msra.mxu0 0.0
    %169 = vmatprep.subr.mxu0 0.0
    %170 = vmatpush1.msra.mxu0 0.0
    %171 = vmatprep.subr.mxu0 0.0
    %172 = vmatpush1.msra.mxu0 0.0
    %173 = vmatprep.subr.mxu0 0.0
    %174 = vmatpush1.msra.mxu0 0.0
    %175 = vmatprep.subr.mxu0 0.0
    %176 = vmatpush1.msra.mxu0 0.0
    %177 = vmatprep.subr.mxu0 0.0
    %178 = vmatpush1.msra.mxu0 0.0
    %179 = vmatprep.subr.mxu0 0.0
    %180 = vmatpush1.msra.mxu0 0.0
    %181 = vmatprep.subr.mxu0 0.0
    %182 = vmatpush1.msra.mxu0 0.0
    %183 = vmatprep.subr.mxu0 0.0
    %184 = vmatpush1.msra.mxu0 0.0
    %185 = vmatprep.subr.mxu0 0.0
    %186 = vmatpush1.msra.mxu0 0.0
    %187 = vmatprep.subr.mxu0 0.0
    %188 = vmatpush1.msra.mxu0 0.0
    %189 = vmatprep.subr.mxu0 0.0
    %190 = vmatpush1.msra.mxu0 0.0
    %191 = vmatprep.subr.mxu0 0.0
    %192 = vmatpush1.msra.mxu0 0.0
    %193 = vmatprep.subr.mxu0 0.0
    %194 = vmatpush1.msra.mxu0 0.0
    %195 = vmatprep.subr.mxu0 0.0
    %196 = vmatpush1.msra.mxu0 0.0
    %197 = vmatprep.subr.mxu0 0.0
    %198 = vmatpush1.msra.mxu0 0.0
    %199 = vmatprep.subr.mxu0 0.0
    %200 = vmatpush1.msra.mxu0 0.0
    %201 = vmatprep.subr.mxu0 0.0
    %202 = vmatpush1.msra.mxu0 0.0
    %203 = vmatprep.subr.mxu0 0.0
    %204 = vmatpush1.msra.mxu0 0.0
    %205 = vmatprep.subr.mxu0 0.0
    %206 = vmatpush1.msra.mxu0 0.0
    %207 = vmatprep.subr.mxu0 0.0
    %208 = vmatpush1.msra.mxu0 0.0
    %209 = vmatprep.subr.mxu0 0.0
    %210 = vmatpush1.msra.mxu0 0.0
    %211 = vmatprep.mubr.f32.mxu0 0.0
    %212 = vmatmul.mubr.f32.gmra.mrb[0].mxu0 %v100
    %v213 = vpop.f32.mrb[0].mxu0
    %v214 = vadd.f32 0.0, %v213
    %v215 = vpop.f32.mrb[0].mxu0
    %216 = vmatprep.mubr.f32.mxu0 0.0
    %217 = vmatmul.mubr.f32.gmra.mrb[0].mxu0 %v103
    %v218 = vpop.f32.mrb[0].mxu0
    %v219 = vadd.f32 0.0, %v218
    %v220 = vpop.f32.mrb[0].mxu0
    %221 = vmatprep.mubr.f32.mxu0 0.0
    %222 = vmatmul.mubr.f32.gmra.mrb[0].mxu0 %v106
    %v223 = vpop.f32.mrb[0].mxu0
    %v224 = vadd.f32 0.0, %v223
    %v225 = vpop.f32.mrb[0].mxu0
    %226 = vmatprep.mubr.f32.mxu0 0.0
    %227 = vmatmul.mubr.f32.gmra.mrb[0].mxu0 %v109
    %v228 = vpop.f32.mrb[0].mxu0
    %v229 = vadd.f32 0.0, %v228
    %v230 = vpop.f32.mrb[0].mxu0
    %231 = vmatprep.mubr.f32.mxu0 0.0
    %232 = vmatmul.mubr.f32.gmra.mrb[0].mxu0 %v112
    %v233 = vpop.f32.mrb[0].mxu0
    %v234 = vadd.f32 0.0, %v233
    %v235 = vpop.f32.mrb[0].mxu0
    %236 = vmatprep.mubr.f32.mxu0 0.0
    %237 = vmatmul.mubr.f32.gmra.mrb[0].mxu0 %v115
    %v238 = vpop.f32.mrb[0].mxu0
    %v239 = vadd.f32 0.0, %v238
    %v240 = vpop.f32.mrb[0].mxu0
    %241 = vmatprep.mubr.f32.mxu0 0.0
    %242 = vmatmul.mubr.f32.gmra.mrb[0].mxu0 %v118
    %v243 = vpop.f32.mrb[0].mxu0
    %v244 = vadd.f32 0.0, %v243
    %v245 = vpop.f32.mrb[0].mxu0
    %246 = vmatprep.mubr.f32.mxu0 0.0
    %247 = vmatmul.mubr.f32.gmra.mrb[0].mxu0 %v121
    %v248 = vpop.f32.mrb[0].mxu0
    %v249 = vadd.f32 0.0, %v248
    %v250 = vpop.f32.mrb[0].mxu0
    %251 = vmatprep.mubr.f32.mxu0 0.0
    %252 = vmatmul.mubr.f32.gmra.mrb[0].mxu0 %v124
    %v253 = vpop.f32.mrb[0].mxu0
    %v254 = vadd.f32 0.0, %v253
    %v255 = vpop.f32.mrb[0].mxu0
    %256 = vmatprep.mubr.f32.mxu0 0.0
    %257 = vmatmul.mubr.f32.gmra.mrb[0].mxu0 %v127
    %v258 = vpop.f32.mrb[0].mxu0
    %v259 = vadd.f32 0.0, %v258
    %v260 = vpop.f32.mrb[0].mxu0
    %261 = vmatprep.mubr.f32.mxu0 0.0
    %262 = vmatmul.mubr.f32.gmra.mrb[0].mxu0 %v130
    %v263 = vpop.f32.mrb[0].mxu0
    %v264 = vadd.f32 0.0, %v263
    %v265 = vpop.f32.mrb[0].mxu0
    %266 = vmatprep.mubr.f32.mxu0 0.0
    %267 = vmatmul.mubr.f32.gmra.mrb[0].mxu0 %v133
    %v268 = vpop.f32.mrb[0].mxu0
    %v269 = vadd.f32 0.0, %v268
    %v270 = vpop.f32.mrb[0].mxu0
    %271 = vmatprep.mubr.f32.mxu0 0.0
    %272 = vmatmul.mubr.f32.gmra.mrb[0].mxu0 %v136
    %v273 = vpop.f32.mrb[0].mxu0
    %v274 = vadd.f32 0.0, %v273
    %v275 = vpop.f32.mrb[0].mxu0
    %276 = vmatprep.mubr.f32.mxu0 0.0
    %277 = vmatmul.mubr.f32.gmra.mrb[0].mxu0 %v139
    %v278 = vpop.f32.mrb[0].mxu0
    %v279 = vadd.f32 0.0, %v278
    %v280 = vpop.f32.mrb[0].mxu0
    %281 = vmatprep.mubr.f32.mxu0 0.0
    %282 = vmatmul.mubr.f32.gmra.mrb[0].mxu0 %v142
    %v283 = vpop.f32.mrb[0].mxu0
    %v284 = vadd.f32 0.0, %v283
    %v285 = vpop.f32.mrb[0].mxu0
    %286 = vmatprep.mubr.f32.mxu0 0.0
    %287 = vmatmul.mubr.f32.gmra.mrb[0].mxu0 %v145
    %v288 = vpop.f32.mrb[0].mxu0
    %v289 = vadd.f32 0.0, %v288
    %v290 = vpop.f32.mrb[0].mxu0
    %291 = vdwg.mxu0
    %v292 = vld [vmem:[%s3] sm:$0x1]
    %v294 = vlaneseq
    %v295 = vshrl.u32 %v294, 7
    %v296 = vsub.s32 0, %v295
    %v297 = vrot.slane %v292, %v296
    %299 = vmatprep.subr.mxu0 0.0
    %300 = vmatpush1.msra.mxu0 %v214
    %301 = vmatprep.subr.mxu0 0.0
    %302 = vmatpush1.msra.mxu0 %v219
    %303 = vmatprep.subr.mxu0 0.0
    %304 = vmatpush1.msra.mxu0 %v224
    %305 = vmatprep.subr.mxu0 0.0
    %306 = vmatpush1.msra.mxu0 %v229
    %307 = vmatprep.subr.mxu0 0.0
    %308 = vmatpush1.msra.mxu0 %v234
    %309 = vmatprep.subr.mxu0 0.0
    %310 = vmatpush1.msra.mxu0 %v239
    %311 = vmatprep.subr.mxu0 0.0
    %312 = vmatpush1.msra.mxu0 %v244
    %313 = vmatprep.subr.mxu0 0.0
    %314 = vmatpush1.msra.mxu0 %v249
    %315 = vmatprep.subr.mxu0 0.0
    %316 = vmatpush1.msra.mxu0 %v254
    %317 = vmatprep.subr.mxu0 0.0
    %318 = vmatpush1.msra.mxu0 %v259
    %319 = vmatprep.subr.mxu0 0.0
    %320 = vmatpush1.msra.mxu0 %v264
    %321 = vmatprep.subr.mxu0 0.0
    %322 = vmatpush1.msra.mxu0 %v269
    %323 = vmatprep.subr.mxu0 0.0
    %324 = vmatpush1.msra.mxu0 %v274
    %325 = vmatprep.subr.mxu0 0.0
    %326 = vmatpush1.msra.mxu0 %v279
    %327 = vmatprep.subr.mxu0 0.0
    %328 = vmatpush1.msra.mxu0 %v284
    %329 = vmatprep.subr.mxu0 0.0
    %330 = vmatpush1.msra.mxu0 %v289
    %331 = vmatprep.subr.mxu0 0.0
    %332 = vmatpush1.msra.mxu0 0.0
    %333 = vmatprep.subr.mxu0 0.0
    %334 = vmatpush1.msra.mxu0 0.0
    %335 = vmatprep.subr.mxu0 0.0
    %336 = vmatpush1.msra.mxu0 0.0
    %337 = vmatprep.subr.mxu0 0.0
    %338 = vmatpush1.msra.mxu0 0.0
    %339 = vmatprep.subr.mxu0 0.0
    %340 = vmatpush1.msra.mxu0 0.0
    %341 = vmatprep.subr.mxu0 0.0
    %342 = vmatpush1.msra.mxu0 0.0
    %343 = vmatprep.subr.mxu0 0.0
    %344 = vmatpush1.msra.mxu0 0.0
    %345 = vmatprep.subr.mxu0 0.0
    %346 = vmatpush1.msra.mxu0 0.0
    %347 = vmatprep.subr.mxu0 0.0
    %348 = vmatpush1.msra.mxu0 0.0
    %349 = vmatprep.subr.mxu0 0.0
    %350 = vmatpush1.msra.mxu0 0.0
    %351 = vmatprep.subr.mxu0 0.0
    %352 = vmatpush1.msra.mxu0 0.0
    %353 = vmatprep.subr.mxu0 0.0
    %354 = vmatpush1.msra.mxu0 0.0
    %355 = vmatprep.subr.mxu0 0.0
    %356 = vmatpush1.msra.mxu0 0.0
    %357 = vmatprep.subr.mxu0 0.0
    %358 = vmatpush1.msra.mxu0 0.0
    %359 = vmatprep.subr.mxu0 0.0
    %360 = vmatpush1.msra.mxu0 0.0
    %361 = vmatprep.subr.mxu0 0.0
    %362 = vmatpush1.msra.mxu0 0.0
    %363 = vmatprep.mubr.f32.mxu0 0.0
    %364 = vmatmul.mubr.f32.gmra.mrb[0].mxu0 %v62
    %v365 = vpop.f32.mrb[0].mxu0
    %v366 = vadd.f32 %v297, %v365
    %v367 = vpop.f32.mrb[0].mxu0
    %368 = vmatprep.mubr.f32.mxu0 0.0
    %369 = vmatmul.mubr.f32.gmra.mrb[0].mxu0 %v63
    %v370 = vpop.f32.mrb[0].mxu0
    %v371 = vadd.f32 %v297, %v370
    %v372 = vpop.f32.mrb[0].mxu0
    %373 = vmatprep.mubr.f32.mxu0 0.0
    %374 = vmatmul.mubr.f32.gmra.mrb[0].mxu0 %v64
    %v375 = vpop.f32.mrb[0].mxu0
    %v376 = vadd.f32 %v297, %v375
    %v377 = vpop.f32.mrb[0].mxu0
    %378 = vmatprep.mubr.f32.mxu0 0.0
    %379 = vmatmul.mubr.f32.gmra.mrb[0].mxu0 %v65
    %v380 = vpop.f32.mrb[0].mxu0
    %v381 = vadd.f32 %v297, %v380
    %v382 = vpop.f32.mrb[0].mxu0
    %383 = vmatprep.mubr.f32.mxu0 0.0
    %384 = vmatmul.mubr.f32.gmra.mrb[0].mxu0 %v66
    %v385 = vpop.f32.mrb[0].mxu0
    %v386 = vadd.f32 %v297, %v385
    %v387 = vpop.f32.mrb[0].mxu0
    %388 = vmatprep.mubr.f32.mxu0 0.0
    %389 = vmatmul.mubr.f32.gmra.mrb[0].mxu0 %v67
    %v390 = vpop.f32.mrb[0].mxu0
    %v391 = vadd.f32 %v297, %v390
    %v392 = vpop.f32.mrb[0].mxu0
    %393 = vmatprep.mubr.f32.mxu0 0.0
    %394 = vmatmul.mubr.f32.gmra.mrb[0].mxu0 %v68
    %v395 = vpop.f32.mrb[0].mxu0
    %v396 = vadd.f32 %v297, %v395
    %v397 = vpop.f32.mrb[0].mxu0
    %398 = vmatprep.mubr.f32.mxu0 0.0
    %399 = vmatmul.mubr.f32.gmra.mrb[0].mxu0 %v69
    %v400 = vpop.f32.mrb[0].mxu0
    %v401 = vadd.f32 %v297, %v400
    %v402 = vpop.f32.mrb[0].mxu0
    %403 = vmatprep.mubr.f32.mxu0 0.0
    %404 = vmatmul.mubr.f32.gmra.mrb[0].mxu0 %v70
    %v405 = vpop.f32.mrb[0].mxu0
    %v406 = vadd.f32 %v297, %v405
    %v407 = vpop.f32.mrb[0].mxu0
    %408 = vmatprep.mubr.f32.mxu0 0.0
    %409 = vmatmul.mubr.f32.gmra.mrb[0].mxu0 %v71
    %v410 = vpop.f32.mrb[0].mxu0
    %v411 = vadd.f32 %v297, %v410
    %v412 = vpop.f32.mrb[0].mxu0
    %413 = vmatprep.mubr.f32.mxu0 0.0
    %414 = vmatmul.mubr.f32.gmra.mrb[0].mxu0 %v72
    %v415 = vpop.f32.mrb[0].mxu0
    %v416 = vadd.f32 %v297, %v415
    %v417 = vpop.f32.mrb[0].mxu0
    %418 = vmatprep.mubr.f32.mxu0 0.0
    %419 = vmatmul.mubr.f32.gmra.mrb[0].mxu0 %v73
    %v420 = vpop.f32.mrb[0].mxu0
    %v421 = vadd.f32 %v297, %v420
    %v422 = vpop.f32.mrb[0].mxu0
    %423 = vmatprep.mubr.f32.mxu0 0.0
    %424 = vmatmul.mubr.f32.gmra.mrb[0].mxu0 %v74
    %v425 = vpop.f32.mrb[0].mxu0
    %v426 = vadd.f32 %v297, %v425
    %v427 = vpop.f32.mrb[0].mxu0
    %428 = vmatprep.mubr.f32.mxu0 0.0
    %429 = vmatmul.mubr.f32.gmra.mrb[0].mxu0 %v75
    %v430 = vpop.f32.mrb[0].mxu0
    %v431 = vadd.f32 %v297, %v430
    %v432 = vpop.f32.mrb[0].mxu0
    %433 = vmatprep.mubr.f32.mxu0 0.0
    %434 = vmatmul.mubr.f32.gmra.mrb[0].mxu0 %v76
    %v435 = vpop.f32.mrb[0].mxu0
    %v436 = vadd.f32 %v297, %v435
    %v437 = vpop.f32.mrb[0].mxu0
    %438 = vmatprep.mubr.f32.mxu0 0.0
    %439 = vmatmul.mubr.f32.gmra.mrb[0].mxu0 %v77
    %v440 = vpop.f32.mrb[0].mxu0
    %v441 = vadd.f32 %v297, %v440
    %v442 = vpop.f32.mrb[0].mxu0
    %443 = vdwg.mxu0
    %v444 = vmax.f32 %v366, 0.0
    %v445 = vmax.f32 %v371, 0.0
    %v446 = vmax.f32 %v376, 0.0
    %v447 = vmax.f32 %v381, 0.0
    %v448 = vmax.f32 %v386, 0.0
    %v449 = vmax.f32 %v391, 0.0
    %v450 = vmax.f32 %v396, 0.0
    %v451 = vmax.f32 %v401, 0.0
    %v452 = vmax.f32 %v406, 0.0
    %v453 = vmax.f32 %v411, 0.0
    %v454 = vmax.f32 %v416, 0.0
    %v455 = vmax.f32 %v421, 0.0
    %v456 = vmax.f32 %v426, 0.0
    %v457 = vmax.f32 %v431, 0.0
    %v458 = vmax.f32 %v436, 0.0
    %v459 = vmax.f32 %v441, 0.0
    %460 = vst [vmem:[#allocation7] sm:$0xff] %v444
    %461 = vst [vmem:[#allocation7 + $0x8] sm:$0xff] %v445
    %462 = vst [vmem:[#allocation7 + $0x10] sm:$0xff] %v446
    %463 = vst [vmem:[#allocation7 + $0x18] sm:$0xff] %v447
    %464 = vst [vmem:[#allocation7 + $0x20] sm:$0xff] %v448
    %465 = vst [vmem:[#allocation7 + $0x28] sm:$0xff] %v449
    %466 = vst [vmem:[#allocation7 + $0x30] sm:$0xff] %v450
    %467 = vst [vmem:[#allocation7 + $0x38] sm:$0xff] %v451
    %468 = vst [vmem:[#allocation7 + $0x40] sm:$0xff] %v452
    %469 = vst [vmem:[#allocation7 + $0x48] sm:$0xff] %v453
    %470 = vst [vmem:[#allocation7 + $0x50] sm:$0xff] %v454
    %471 = vst [vmem:[#allocation7 + $0x58] sm:$0xff] %v455
    %472 = vst [vmem:[#allocation7 + $0x60] sm:$0xff] %v456
    %473 = vst [vmem:[#allocation7 + $0x68] sm:$0xff] %v457
    %474 = vst [vmem:[#allocation7 + $0x70] sm:$0xff] %v458
    %475 = vst [vmem:[#allocation7 + $0x78] sm:$0xff] %v459
    %v476 = vld [vmem:[#allocation2] sm:$0xff]
    %v477 = vld [vmem:[#allocation2 + $0x8] sm:$0xff]
    %v478 = vld [vmem:[#allocation2 + $0x10] sm:$0xff]
    %v479 = vld [vmem:[#allocation2 + $0x18] sm:$0xff]
    %v480 = vld [vmem:[#allocation2 + $0x20] sm:$0xff]
    %v481 = vld [vmem:[#allocation2 + $0x28] sm:$0xff]
    %v482 = vld [vmem:[#allocation2 + $0x30] sm:$0xff]
    %v483 = vld [vmem:[#allocation2 + $0x38] sm:$0xff]
    %v484 = vld [vmem:[#allocation2 + $0x40] sm:$0xff]
    %v485 = vld [vmem:[#allocation2 + $0x48] sm:$0xff]
    %v486 = vld [vmem:[#allocation2 + $0x50] sm:$0xff]
    %v487 = vld [vmem:[#allocation2 + $0x58] sm:$0xff]
    %v488 = vld [vmem:[#allocation2 + $0x60] sm:$0xff]
    %v489 = vld [vmem:[#allocation2 + $0x68] sm:$0xff]
    %v490 = vld [vmem:[#allocation2 + $0x70] sm:$0xff]
    %v491 = vld [vmem:[#allocation2 + $0x78] sm:$0xff]
    %492 = vmatprep.subr.mxu0 0.0
    %493 = vmatpush1.msra.mxu0 %v476
    %494 = vmatprep.subr.mxu0 0.0
    %495 = vmatpush1.msra.mxu0 %v477
    %496 = vmatprep.subr.mxu0 0.0
    %497 = vmatpush1.msra.mxu0 %v478
    %498 = vmatprep.subr.mxu0 0.0
    %499 = vmatpush1.msra.mxu0 %v479
    %500 = vmatprep.subr.mxu0 0.0
    %501 = vmatpush1.msra.mxu0 %v480
    %502 = vmatprep.subr.mxu0 0.0
    %503 = vmatpush1.msra.mxu0 %v481
    %504 = vmatprep.subr.mxu0 0.0
    %505 = vmatpush1.msra.mxu0 %v482
    %506 = vmatprep.subr.mxu0 0.0
    %507 = vmatpush1.msra.mxu0 %v483
    %508 = vmatprep.subr.mxu0 0.0
    %509 = vmatpush1.msra.mxu0 %v484
    %510 = vmatprep.subr.mxu0 0.0
    %511 = vmatpush1.msra.mxu0 %v485
    %512 = vmatprep.subr.mxu0 0.0
    %513 = vmatpush1.msra.mxu0 %v486
    %514 = vmatprep.subr.mxu0 0.0
    %515 = vmatpush1.msra.mxu0 %v487
    %516 = vmatprep.subr.mxu0 0.0
    %517 = vmatpush1.msra.mxu0 %v488
    %518 = vmatprep.subr.mxu0 0.0
    %519 = vmatpush1.msra.mxu0 %v489
    %520 = vmatprep.subr.mxu0 0.0
    %521 = vmatpush1.msra.mxu0 %v490
    %522 = vmatprep.subr.mxu0 0.0
    %523 = vmatpush1.msra.mxu0 %v491
    %524 = vmatprep.subr.mxu0 0.0
    %525 = vmatpush1.msra.mxu0 0.0
    %526 = vmatprep.subr.mxu0 0.0
    %527 = vmatpush1.msra.mxu0 0.0
    %528 = vmatprep.subr.mxu0 0.0
    %529 = vmatpush1.msra.mxu0 0.0
    %530 = vmatprep.subr.mxu0 0.0
    %531 = vmatpush1.msra.mxu0 0.0
    %532 = vmatprep.subr.mxu0 0.0
    %533 = vmatpush1.msra.mxu0 0.0
    %534 = vmatprep.subr.mxu0 0.0
    %535 = vmatpush1.msra.mxu0 0.0
    %536 = vmatprep.subr.mxu0 0.0
    %537 = vmatpush1.msra.mxu0 0.0
    %538 = vmatprep.subr.mxu0 0.0
    %539 = vmatpush1.msra.mxu0 0.0
    %540 = vmatprep.subr.mxu0 0.0
    %541 = vmatpush1.msra.mxu0 0.0
    %542 = vmatprep.subr.mxu0 0.0
    %543 = vmatpush1.msra.mxu0 0.0
    %544 = vmatprep.subr.mxu0 0.0
    %545 = vmatpush1.msra.mxu0 0.0
    %546 = vmatprep.subr.mxu0 0.0
    %547 = vmatpush1.msra.mxu0 0.0
    %548 = vmatprep.subr.mxu0 0.0
    %549 = vmatpush1.msra.mxu0 0.0
    %550 = vmatprep.subr.mxu0 0.0
    %551 = vmatpush1.msra.mxu0 0.0
    %552 = vmatprep.subr.mxu0 0.0
    %553 = vmatpush1.msra.mxu0 0.0
    %554 = vmatprep.subr.mxu0 0.0
    %555 = vmatpush1.msra.mxu0 0.0
    %556 = vmatprep.mubr.f32.mxu0 0.0
    %557 = vmatmul.mubr.f32.gmra.mrb[0].mxu0 %v444
    %v558 = vpop.f32.mrb[0].mxu0
    %v559 = vadd.f32 0.0, %v558
    %v560 = vpop.f32.mrb[0].mxu0
    %561 = vmatprep.mubr.f32.mxu0 0.0
    %562 = vmatmul.mubr.f32.gmra.mrb[0].mxu0 %v445
    %v563 = vpop.f32.mrb[0].mxu0
    %v564 = vadd.f32 0.0, %v563
    %v565 = vpop.f32.mrb[0].mxu0
    %566 = vmatprep.mubr.f32.mxu0 0.0
    %567 = vmatmul.mubr.f32.gmra.mrb[0].mxu0 %v446
    %v568 = vpop.f32.mrb[0].mxu0
    %v569 = vadd.f32 0.0, %v568
    %v570 = vpop.f32.mrb[0].mxu0
    %571 = vmatprep.mubr.f32.mxu0 0.0
    %572 = vmatmul.mubr.f32.gmra.mrb[0].mxu0 %v447
    %v573 = vpop.f32.mrb[0].mxu0
    %v574 = vadd.f32 0.0, %v573
    %v575 = vpop.f32.mrb[0].mxu0
    %576 = vmatprep.mubr.f32.mxu0 0.0
    %577 = vmatmul.mubr.f32.gmra.mrb[0].mxu0 %v448
    %v578 = vpop.f32.mrb[0].mxu0
    %v579 = vadd.f32 0.0, %v578
    %v580 = vpop.f32.mrb[0].mxu0
    %581 = vmatprep.mubr.f32.mxu0 0.0
    %582 = vmatmul.mubr.f32.gmra.mrb[0].mxu0 %v449
    %v583 = vpop.f32.mrb[0].mxu0
    %v584 = vadd.f32 0.0, %v583
    %v585 = vpop.f32.mrb[0].mxu0
    %586 = vmatprep.mubr.f32.mxu0 0.0
    %587 = vmatmul.mubr.f32.gmra.mrb[0].mxu0 %v450
    %v588 = vpop.f32.mrb[0].mxu0
    %v589 = vadd.f32 0.0, %v588
    %v590 = vpop.f32.mrb[0].mxu0
    %591 = vmatprep.mubr.f32.mxu0 0.0
    %592 = vmatmul.mubr.f32.gmra.mrb[0].mxu0 %v451
    %v593 = vpop.f32.mrb[0].mxu0
    %v594 = vadd.f32 0.0, %v593
    %v595 = vpop.f32.mrb[0].mxu0
    %596 = vmatprep.mubr.f32.mxu0 0.0
    %597 = vmatmul.mubr.f32.gmra.mrb[0].mxu0 %v452
    %v598 = vpop.f32.mrb[0].mxu0
    %v599 = vadd.f32 0.0, %v598
    %v600 = vpop.f32.mrb[0].mxu0
    %601 = vmatprep.mubr.f32.mxu0 0.0
    %602 = vmatmul.mubr.f32.gmra.mrb[0].mxu0 %v453
    %v603 = vpop.f32.mrb[0].mxu0
    %v604 = vadd.f32 0.0, %v603
    %v605 = vpop.f32.mrb[0].mxu0
    %606 = vmatprep.mubr.f32.mxu0 0.0
    %607 = vmatmul.mubr.f32.gmra.mrb[0].mxu0 %v454
    %v608 = vpop.f32.mrb[0].mxu0
    %v609 = vadd.f32 0.0, %v608
    %v610 = vpop.f32.mrb[0].mxu0
    %611 = vmatprep.mubr.f32.mxu0 0.0
    %612 = vmatmul.mubr.f32.gmra.mrb[0].mxu0 %v455
    %v613 = vpop.f32.mrb[0].mxu0
    %v614 = vadd.f32 0.0, %v613
    %v615 = vpop.f32.mrb[0].mxu0
    %616 = vmatprep.mubr.f32.mxu0 0.0
    %617 = vmatmul.mubr.f32.gmra.mrb[0].mxu0 %v456
    %v618 = vpop.f32.mrb[0].mxu0
    %v619 = vadd.f32 0.0, %v618
    %v620 = vpop.f32.mrb[0].mxu0
    %621 = vmatprep.mubr.f32.mxu0 0.0
    %622 = vmatmul.mubr.f32.gmra.mrb[0].mxu0 %v457
    %v623 = vpop.f32.mrb[0].mxu0
    %v624 = vadd.f32 0.0, %v623
    %v625 = vpop.f32.mrb[0].mxu0
    %626 = vmatprep.mubr.f32.mxu0 0.0
    %627 = vmatmul.mubr.f32.gmra.mrb[0].mxu0 %v458
    %v628 = vpop.f32.mrb[0].mxu0
    %v629 = vadd.f32 0.0, %v628
    %v630 = vpop.f32.mrb[0].mxu0
    %631 = vmatprep.mubr.f32.mxu0 0.0
    %632 = vmatmul.mubr.f32.gmra.mrb[0].mxu0 %v459
    %v633 = vpop.f32.mrb[0].mxu0
    %v634 = vadd.f32 0.0, %v633
    %v635 = vpop.f32.mrb[0].mxu0
    %636 = vdwg.mxu0
    %v637 = vld [vmem:[%s5] sm:$0x1]
    %v639 = vlaneseq
    %v640 = vshrl.u32 %v639, 7
    %v641 = vsub.s32 0, %v640
    %v642 = vrot.slane %v637, %v641
    %644 = vmatprep.subr.mxu0 0.0
    %645 = vmatpush1.msra.mxu0 %v559
    %646 = vmatprep.subr.mxu0 0.0
    %647 = vmatpush1.msra.mxu0 %v564
    %648 = vmatprep.subr.mxu0 0.0
    %649 = vmatpush1.msra.mxu0 %v569
    %650 = vmatprep.subr.mxu0 0.0
    %651 = vmatpush1.msra.mxu0 %v574
    %652 = vmatprep.subr.mxu0 0.0
    %653 = vmatpush1.msra.mxu0 %v579
    %654 = vmatprep.subr.mxu0 0.0
    %655 = vmatpush1.msra.mxu0 %v584
    %656 = vmatprep.subr.mxu0 0.0
    %657 = vmatpush1.msra.mxu0 %v589
    %658 = vmatprep.subr.mxu0 0.0
    %659 = vmatpush1.msra.mxu0 %v594
    %660 = vmatprep.subr.mxu0 0.0
    %661 = vmatpush1.msra.mxu0 %v599
    %662 = vmatprep.subr.mxu0 0.0
    %663 = vmatpush1.msra.mxu0 %v604
    %664 = vmatprep.subr.mxu0 0.0
    %665 = vmatpush1.msra.mxu0 %v609
    %666 = vmatprep.subr.mxu0 0.0
    %667 = vmatpush1.msra.mxu0 %v614
    %668 = vmatprep.subr.mxu0 0.0
    %669 = vmatpush1.msra.mxu0 %v619
    %670 = vmatprep.subr.mxu0 0.0
    %671 = vmatpush1.msra.mxu0 %v624
    %672 = vmatprep.subr.mxu0 0.0
    %673 = vmatpush1.msra.mxu0 %v629
    %674 = vmatprep.subr.mxu0 0.0
    %675 = vmatpush1.msra.mxu0 %v634
    %676 = vmatprep.subr.mxu0 0.0
    %677 = vmatpush1.msra.mxu0 0.0
    %678 = vmatprep.subr.mxu0 0.0
    %679 = vmatpush1.msra.mxu0 0.0
    %680 = vmatprep.subr.mxu0 0.0
    %681 = vmatpush1.msra.mxu0 0.0
    %682 = vmatprep.subr.mxu0 0.0
    %683 = vmatpush1.msra.mxu0 0.0
    %684 = vmatprep.subr.mxu0 0.0
    %685 = vmatpush1.msra.mxu0 0.0
    %686 = vmatprep.subr.mxu0 0.0
    %687 = vmatpush1.msra.mxu0 0.0
    %688 = vmatprep.subr.mxu0 0.0
    %689 = vmatpush1.msra.mxu0 0.0
    %690 = vmatprep.subr.mxu0 0.0
    %691 = vmatpush1.msra.mxu0 0.0
    %692 = vmatprep.subr.mxu0 0.0
    %693 = vmatpush1.msra.mxu0 0.0
    %694 = vmatprep.subr.mxu0 0.0
    %695 = vmatpush1.msra.mxu0 0.0
    %696 = vmatprep.subr.mxu0 0.0
    %697 = vmatpush1.msra.mxu0 0.0
    %698 = vmatprep.subr.mxu0 0.0
    %699 = vmatpush1.msra.mxu0 0.0
    %700 = vmatprep.subr.mxu0 0.0
    %701 = vmatpush1.msra.mxu0 0.0
    %702 = vmatprep.subr.mxu0 0.0
    %703 = vmatpush1.msra.mxu0 0.0
    %704 = vmatprep.subr.mxu0 0.0
    %705 = vmatpush1.msra.mxu0 0.0
    %706 = vmatprep.subr.mxu0 0.0
    %707 = vmatpush1.msra.mxu0 0.0
    %708 = vmatprep.mubr.f32.mxu0 0.0
    %709 = vmatmul.mubr.f32.gmra.mrb[0].mxu0 %v62
    %v710 = vpop.f32.mrb[0].mxu0
    %v711 = vadd.f32 %v642, %v710
    %v712 = vpop.f32.mrb[0].mxu0
    %713 = vmatprep.mubr.f32.mxu0 0.0
    %714 = vmatmul.mubr.f32.gmra.mrb[0].mxu0 %v63
    %v715 = vpop.f32.mrb[0].mxu0
    %v716 = vadd.f32 %v642, %v715
    %v717 = vpop.f32.mrb[0].mxu0
    %718 = vmatprep.mubr.f32.mxu0 0.0
    %719 = vmatmul.mubr.f32.gmra.mrb[0].mxu0 %v64
    %v720 = vpop.f32.mrb[0].mxu0
    %v721 = vadd.f32 %v642, %v720
    %v722 = vpop.f32.mrb[0].mxu0
    %723 = vmatprep.mubr.f32.mxu0 0.0
    %724 = vmatmul.mubr.f32.gmra.mrb[0].mxu0 %v65
    %v725 = vpop.f32.mrb[0].mxu0
    %v726 = vadd.f32 %v642, %v725
    %v727 = vpop.f32.mrb[0].mxu0
    %728 = vmatprep.mubr.f32.mxu0 0.0
    %729 = vmatmul.mubr.f32.gmra.mrb[0].mxu0 %v66
    %v730 = vpop.f32.mrb[0].mxu0
    %v731 = vadd.f32 %v642, %v730
    %v732 = vpop.f32.mrb[0].mxu0
    %733 = vmatprep.mubr.f32.mxu0 0.0
    %734 = vmatmul.mubr.f32.gmra.mrb[0].mxu0 %v67
    %v735 = vpop.f32.mrb[0].mxu0
    %v736 = vadd.f32 %v642, %v735
    %v737 = vpop.f32.mrb[0].mxu0
    %738 = vmatprep.mubr.f32.mxu0 0.0
    %739 = vmatmul.mubr.f32.gmra.mrb[0].mxu0 %v68
    %v740 = vpop.f32.mrb[0].mxu0
    %v741 = vadd.f32 %v642, %v740
    %v742 = vpop.f32.mrb[0].mxu0
    %743 = vmatprep.mubr.f32.mxu0 0.0
    %744 = vmatmul.mubr.f32.gmra.mrb[0].mxu0 %v69
    %v745 = vpop.f32.mrb[0].mxu0
    %v746 = vadd.f32 %v642, %v745
    %v747 = vpop.f32.mrb[0].mxu0
    %748 = vmatprep.mubr.f32.mxu0 0.0
    %749 = vmatmul.mubr.f32.gmra.mrb[0].mxu0 %v70
    %v750 = vpop.f32.mrb[0].mxu0
    %v751 = vadd.f32 %v642, %v750
    %v752 = vpop.f32.mrb[0].mxu0
    %753 = vmatprep.mubr.f32.mxu0 0.0
    %754 = vmatmul.mubr.f32.gmra.mrb[0].mxu0 %v71
    %v755 = vpop.f32.mrb[0].mxu0
    %v756 = vadd.f32 %v642, %v755
    %v757 = vpop.f32.mrb[0].mxu0
    %758 = vmatprep.mubr.f32.mxu0 0.0
    %759 = vmatmul.mubr.f32.gmra.mrb[0].mxu0 %v72
    %v760 = vpop.f32.mrb[0].mxu0
    %v761 = vadd.f32 %v642, %v760
    %v762 = vpop.f32.mrb[0].mxu0
    %763 = vmatprep.mubr.f32.mxu0 0.0
    %764 = vmatmul.mubr.f32.gmra.mrb[0].mxu0 %v73
    %v765 = vpop.f32.mrb[0].mxu0
    %v766 = vadd.f32 %v642, %v765
    %v767 = vpop.f32.mrb[0].mxu0
    %768 = vmatprep.mubr.f32.mxu0 0.0
    %769 = vmatmul.mubr.f32.gmra.mrb[0].mxu0 %v74
    %v770 = vpop.f32.mrb[0].mxu0
    %v771 = vadd.f32 %v642, %v770
    %v772 = vpop.f32.mrb[0].mxu0
    %773 = vmatprep.mubr.f32.mxu0 0.0
    %774 = vmatmul.mubr.f32.gmra.mrb[0].mxu0 %v75
    %v775 = vpop.f32.mrb[0].mxu0
    %v776 = vadd.f32 %v642, %v775
    %v777 = vpop.f32.mrb[0].mxu0
    %778 = vmatprep.mubr.f32.mxu0 0.0
    %779 = vmatmul.mubr.f32.gmra.mrb[0].mxu0 %v76
    %v780 = vpop.f32.mrb[0].mxu0
    %v781 = vadd.f32 %v642, %v780
    %v782 = vpop.f32.mrb[0].mxu0
    %783 = vmatprep.mubr.f32.mxu0 0.0
    %784 = vmatmul.mubr.f32.gmra.mrb[0].mxu0 %v77
    %v785 = vpop.f32.mrb[0].mxu0
    %v786 = vadd.f32 %v642, %v785
    %v787 = vpop.f32.mrb[0].mxu0
    %788 = vdwg.mxu0
    %789 = vst [vmem:[#allocation8] sm:$0xff] %v711
    %790 = vst [vmem:[#allocation8 + $0x8] sm:$0xff] %v716
    %791 = vst [vmem:[#allocation8 + $0x10] sm:$0xff] %v721
    %792 = vst [vmem:[#allocation8 + $0x18] sm:$0xff] %v726
    %793 = vst [vmem:[#allocation8 + $0x20] sm:$0xff] %v731
    %794 = vst [vmem:[#allocation8 + $0x28] sm:$0xff] %v736
    %795 = vst [vmem:[#allocation8 + $0x30] sm:$0xff] %v741
    %796 = vst [vmem:[#allocation8 + $0x38] sm:$0xff] %v746
    %797 = vst [vmem:[#allocation8 + $0x40] sm:$0xff] %v751
    %798 = vst [vmem:[#allocation8 + $0x48] sm:$0xff] %v756
    %799 = vst [vmem:[#allocation8 + $0x50] sm:$0xff] %v761
    %800 = vst [vmem:[#allocation8 + $0x58] sm:$0xff] %v766
    %801 = vst [vmem:[#allocation8 + $0x60] sm:$0xff] %v771
    %802 = vst [vmem:[#allocation8 + $0x68] sm:$0xff] %v776
    %803 = vst [vmem:[#allocation8 + $0x70] sm:$0xff] %v781
    %804 = vst [vmem:[#allocation8 + $0x78] sm:$0xff] %v786
    %v805 = vld [vmem:[#allocation5] sm:$0xff]
    %v806 = vld [vmem:[#allocation5 + $0x8] sm:$0xff]
    %v807 = vld [vmem:[#allocation5 + $0x10] sm:$0xff]
    %v808 = vld [vmem:[#allocation5 + $0x18] sm:$0xff]
    %v809 = vld [vmem:[#allocation5 + $0x20] sm:$0xff]
    %v810 = vld [vmem:[#allocation5 + $0x28] sm:$0xff]
    %v811 = vld [vmem:[#allocation5 + $0x30] sm:$0xff]
    %v812 = vld [vmem:[#allocation5 + $0x38] sm:$0xff]
    %v813 = vld [vmem:[#allocation5 + $0x40] sm:$0xff]
    %v814 = vld [vmem:[#allocation5 + $0x48] sm:$0xff]
    %v815 = vld [vmem:[#allocation5 + $0x50] sm:$0xff]
    %v816 = vld [vmem:[#allocation5 + $0x58] sm:$0xff]
    %v817 = vld [vmem:[#allocation5 + $0x60] sm:$0xff]
    %v818 = vld [vmem:[#allocation5 + $0x68] sm:$0xff]
    %v819 = vld [vmem:[#allocation5 + $0x70] sm:$0xff]
    %v820 = vld [vmem:[#allocation5 + $0x78] sm:$0xff]
    %821 = vmatprep.subr.mxu0 0.0
    %822 = vmatpush1.msra.mxu0 %v805
    %823 = vmatprep.subr.mxu0 0.0
    %824 = vmatpush1.msra.mxu0 %v806
    %825 = vmatprep.subr.mxu0 0.0
    %826 = vmatpush1.msra.mxu0 %v807
    %827 = vmatprep.subr.mxu0 0.0
    %828 = vmatpush1.msra.mxu0 %v808
    %829 = vmatprep.subr.mxu0 0.0
    %830 = vmatpush1.msra.mxu0 %v809
    %831 = vmatprep.subr.mxu0 0.0
    %832 = vmatpush1.msra.mxu0 %v810
    %833 = vmatprep.subr.mxu0 0.0
    %834 = vmatpush1.msra.mxu0 %v811
    %835 = vmatprep.subr.mxu0 0.0
    %836 = vmatpush1.msra.mxu0 %v812
    %837 = vmatprep.subr.mxu0 0.0
    %838 = vmatpush1.msra.mxu0 %v813
    %839 = vmatprep.subr.mxu0 0.0
    %840 = vmatpush1.msra.mxu0 %v814
    %841 = vmatprep.subr.mxu0 0.0
    %842 = vmatpush1.msra.mxu0 %v815
    %843 = vmatprep.subr.mxu0 0.0
    %844 = vmatpush1.msra.mxu0 %v816
    %845 = vmatprep.subr.mxu0 0.0
    %846 = vmatpush1.msra.mxu0 %v817
    %847 = vmatprep.subr.mxu0 0.0
    %848 = vmatpush1.msra.mxu0 %v818
    %849 = vmatprep.subr.mxu0 0.0
    %850 = vmatpush1.msra.mxu0 %v819
    %851 = vmatprep.subr.mxu0 0.0
    %852 = vmatpush1.msra.mxu0 %v820
    %853 = vmatprep.subr.mxu0 0.0
    %854 = vmatpush1.msra.mxu0 0.0
    %855 = vmatprep.subr.mxu0 0.0
    %856 = vmatpush1.msra.mxu0 0.0
    %857 = vmatprep.subr.mxu0 0.0
    %858 = vmatpush1.msra.mxu0 0.0
    %859 = vmatprep.subr.mxu0 0.0
    %860 = vmatpush1.msra.mxu0 0.0
    %861 = vmatprep.subr.mxu0 0.0
    %862 = vmatpush1.msra.mxu0 0.0
    %863 = vmatprep.subr.mxu0 0.0
    %864 = vmatpush1.msra.mxu0 0.0
    %865 = vmatprep.subr.mxu0 0.0
    %866 = vmatpush1.msra.mxu0 0.0
    %867 = vmatprep.subr.mxu0 0.0
    %868 = vmatpush1.msra.mxu0 0.0
    %869 = vmatprep.subr.mxu0 0.0
    %870 = vmatpush1.msra.mxu0 0.0
    %871 = vmatprep.subr.mxu0 0.0
    %872 = vmatpush1.msra.mxu0 0.0
    %873 = vmatprep.subr.mxu0 0.0
    %874 = vmatpush1.msra.mxu0 0.0
    %875 = vmatprep.subr.mxu0 0.0
    %876 = vmatpush1.msra.mxu0 0.0
    %877 = vmatprep.subr.mxu0 0.0
    %878 = vmatpush1.msra.mxu0 0.0
    %879 = vmatprep.subr.mxu0 0.0
    %880 = vmatpush1.msra.mxu0 0.0
    %881 = vmatprep.subr.mxu0 0.0
    %882 = vmatpush1.msra.mxu0 0.0
    %883 = vmatprep.subr.mxu0 0.0
    %884 = vmatpush1.msra.mxu0 0.0
    %885 = vmatprep.mubr.f32.mxu0 0.0
    %886 = vmatmul.mubr.f32.gmra.mrb[0].mxu0 %v711
    %v887 = vpop.f32.mrb[0].mxu0
    %v888 = vadd.f32 0.0, %v887
    %v889 = vpop.f32.mrb[0].mxu0
    %890 = vmatprep.mubr.f32.mxu0 0.0
    %891 = vmatmul.mubr.f32.gmra.mrb[0].mxu0 %v716
    %v892 = vpop.f32.mrb[0].mxu0
    %v893 = vadd.f32 0.0, %v892
    %v894 = vpop.f32.mrb[0].mxu0
    %895 = vmatprep.mubr.f32.mxu0 0.0
    %896 = vmatmul.mubr.f32.gmra.mrb[0].mxu0 %v721
    %v897 = vpop.f32.mrb[0].mxu0
    %v898 = vadd.f32 0.0, %v897
    %v899 = vpop.f32.mrb[0].mxu0
    %900 = vmatprep.mubr.f32.mxu0 0.0
    %901 = vmatmul.mubr.f32.gmra.mrb[0].mxu0 %v726
    %v902 = vpop.f32.mrb[0].mxu0
    %v903 = vadd.f32 0.0, %v902
    %v904 = vpop.f32.mrb[0].mxu0
    %905 = vmatprep.mubr.f32.mxu0 0.0
    %906 = vmatmul.mubr.f32.gmra.mrb[0].mxu0 %v731
    %v907 = vpop.f32.mrb[0].mxu0
    %v908 = vadd.f32 0.0, %v907
    %v909 = vpop.f32.mrb[0].mxu0
    %910 = vmatprep.mubr.f32.mxu0 0.0
    %911 = vmatmul.mubr.f32.gmra.mrb[0].mxu0 %v736
    %v912 = vpop.f32.mrb[0].mxu0
    %v913 = vadd.f32 0.0, %v912
    %v914 = vpop.f32.mrb[0].mxu0
    %915 = vmatprep.mubr.f32.mxu0 0.0
    %916 = vmatmul.mubr.f32.gmra.mrb[0].mxu0 %v741
    %v917 = vpop.f32.mrb[0].mxu0
    %v918 = vadd.f32 0.0, %v917
    %v919 = vpop.f32.mrb[0].mxu0
    %920 = vmatprep.mubr.f32.mxu0 0.0
    %921 = vmatmul.mubr.f32.gmra.mrb[0].mxu0 %v746
    %v922 = vpop.f32.mrb[0].mxu0
    %v923 = vadd.f32 0.0, %v922
    %v924 = vpop.f32.mrb[0].mxu0
    %925 = vmatprep.mubr.f32.mxu0 0.0
    %926 = vmatmul.mubr.f32.gmra.mrb[0].mxu0 %v751
    %v927 = vpop.f32.mrb[0].mxu0
    %v928 = vadd.f32 0.0, %v927
    %v929 = vpop.f32.mrb[0].mxu0
    %930 = vmatprep.mubr.f32.mxu0 0.0
    %931 = vmatmul.mubr.f32.gmra.mrb[0].mxu0 %v756
    %v932 = vpop.f32.mrb[0].mxu0
    %v933 = vadd.f32 0.0, %v932
    %v934 = vpop.f32.mrb[0].mxu0
    %935 = vmatprep.mubr.f32.mxu0 0.0
    %936 = vmatmul.mubr.f32.gmra.mrb[0].mxu0 %v761
    %v937 = vpop.f32.mrb[0].mxu0
    %v938 = vadd.f32 0.0, %v937
    %v939 = vpop.f32.mrb[0].mxu0
    %940 = vmatprep.mubr.f32.mxu0 0.0
    %941 = vmatmul.mubr.f32.gmra.mrb[0].mxu0 %v766
    %v942 = vpop.f32.mrb[0].mxu0
    %v943 = vadd.f32 0.0, %v942
    %v944 = vpop.f32.mrb[0].mxu0
    %945 = vmatprep.mubr.f32.mxu0 0.0
    %946 = vmatmul.mubr.f32.gmra.mrb[0].mxu0 %v771
    %v947 = vpop.f32.mrb[0].mxu0
    %v948 = vadd.f32 0.0, %v947
    %v949 = vpop.f32.mrb[0].mxu0
    %950 = vmatprep.mubr.f32.mxu0 0.0
    %951 = vmatmul.mubr.f32.gmra.mrb[0].mxu0 %v776
    %v952 = vpop.f32.mrb[0].mxu0
    %v953 = vadd.f32 0.0, %v952
    %v954 = vpop.f32.mrb[0].mxu0
    %955 = vmatprep.mubr.f32.mxu0 0.0
    %956 = vmatmul.mubr.f32.gmra.mrb[0].mxu0 %v781
    %v957 = vpop.f32.mrb[0].mxu0
    %v958 = vadd.f32 0.0, %v957
    %v959 = vpop.f32.mrb[0].mxu0
    %960 = vmatprep.mubr.f32.mxu0 0.0
    %961 = vmatmul.mubr.f32.gmra.mrb[0].mxu0 %v786
    %v962 = vpop.f32.mrb[0].mxu0
    %v963 = vadd.f32 0.0, %v962
    %v964 = vpop.f32.mrb[0].mxu0
    %965 = vdwg.mxu0
    %v966 = vld [vmem:[%s7] sm:$0x1]
    %v968 = vlaneseq
    %v969 = vshrl.u32 %v968, 7
    %v970 = vsub.s32 0, %v969
    %v971 = vrot.slane %v966, %v970
    %973 = vmatprep.subr.mxu0 0.0
    %974 = vmatpush1.msra.mxu0 %v888
    %975 = vmatprep.subr.mxu0 0.0
    %976 = vmatpush1.msra.mxu0 %v893
    %977 = vmatprep.subr.mxu0 0.0
    %978 = vmatpush1.msra.mxu0 %v898
    %979 = vmatprep.subr.mxu0 0.0
    %980 = vmatpush1.msra.mxu0 %v903
    %981 = vmatprep.subr.mxu0 0.0
    %982 = vmatpush1.msra.mxu0 %v908
    %983 = vmatprep.subr.mxu0 0.0
    %984 = vmatpush1.msra.mxu0 %v913
    %985 = vmatprep.subr.mxu0 0.0
    %986 = vmatpush1.msra.mxu0 %v918
    %987 = vmatprep.subr.mxu0 0.0
    %988 = vmatpush1.msra.mxu0 %v923
    %989 = vmatprep.subr.mxu0 0.0
    %990 = vmatpush1.msra.mxu0 %v928
    %991 = vmatprep.subr.mxu0 0.0
    %992 = vmatpush1.msra.mxu0 %v933
    %993 = vmatprep.subr.mxu0 0.0
    %994 = vmatpush1.msra.mxu0 %v938
    %995 = vmatprep.subr.mxu0 0.0
    %996 = vmatpush1.msra.mxu0 %v943
    %997 = vmatprep.subr.mxu0 0.0
    %998 = vmatpush1.msra.mxu0 %v948
    %999 = vmatprep.subr.mxu0 0.0
    %1000 = vmatpush1.msra.mxu0 %v953
    %1001 = vmatprep.subr.mxu0 0.0
    %1002 = vmatpush1.msra.mxu0 %v958
    %1003 = vmatprep.subr.mxu0 0.0
    %1004 = vmatpush1.msra.mxu0 %v963
    %1005 = vmatprep.subr.mxu0 0.0
    %1006 = vmatpush1.msra.mxu0 0.0
    %1007 = vmatprep.subr.mxu0 0.0
    %1008 = vmatpush1.msra.mxu0 0.0
    %1009 = vmatprep.subr.mxu0 0.0
    %1010 = vmatpush1.msra.mxu0 0.0
    %1011 = vmatprep.subr.mxu0 0.0
    %1012 = vmatpush1.msra.mxu0 0.0
    %1013 = vmatprep.subr.mxu0 0.0
    %1014 = vmatpush1.msra.mxu0 0.0
    %1015 = vmatprep.subr.mxu0 0.0
    %1016 = vmatpush1.msra.mxu0 0.0
    %1017 = vmatprep.subr.mxu0 0.0
    %1018 = vmatpush1.msra.mxu0 0.0
    %1019 = vmatprep.subr.mxu0 0.0
    %1020 = vmatpush1.msra.mxu0 0.0
    %1021 = vmatprep.subr.mxu0 0.0
    %1022 = vmatpush1.msra.mxu0 0.0
    %1023 = vmatprep.subr.mxu0 0.0
    %1024 = vmatpush1.msra.mxu0 0.0
    %1025 = vmatprep.subr.mxu0 0.0
    %1026 = vmatpush1.msra.mxu0 0.0
    %1027 = vmatprep.subr.mxu0 0.0
    %1028 = vmatpush1.msra.mxu0 0.0
    %1029 = vmatprep.subr.mxu0 0.0
    %1030 = vmatpush1.msra.mxu0 0.0
    %1031 = vmatprep.subr.mxu0 0.0
    %1032 = vmatpush1.msra.mxu0 0.0
    %1033 = vmatprep.subr.mxu0 0.0
    %1034 = vmatpush1.msra.mxu0 0.0
    %1035 = vmatprep.subr.mxu0 0.0
    %1036 = vmatpush1.msra.mxu0 0.0
    %1037 = vmatprep.mubr.f32.mxu0 0.0
    %1038 = vmatmul.mubr.f32.gmra.mrb[0].mxu0 %v62
    %v1039 = vpop.f32.mrb[0].mxu0
    %v1040 = vadd.f32 %v971, %v1039
    %v1041 = vpop.f32.mrb[0].mxu0
    %1042 = vmatprep.mubr.f32.mxu0 0.0
    %1043 = vmatmul.mubr.f32.gmra.mrb[0].mxu0 %v63
    %v1044 = vpop.f32.mrb[0].mxu0
    %v1045 = vadd.f32 %v971, %v1044
    %v1046 = vpop.f32.mrb[0].mxu0
    %1047 = vmatprep.mubr.f32.mxu0 0.0
    %1048 = vmatmul.mubr.f32.gmra.mrb[0].mxu0 %v64
    %v1049 = vpop.f32.mrb[0].mxu0
    %v1050 = vadd.f32 %v971, %v1049
    %v1051 = vpop.f32.mrb[0].mxu0
    %1052 = vmatprep.mubr.f32.mxu0 0.0
    %1053 = vmatmul.mubr.f32.gmra.mrb[0].mxu0 %v65
    %v1054 = vpop.f32.mrb[0].mxu0
    %v1055 = vadd.f32 %v971, %v1054
    %v1056 = vpop.f32.mrb[0].mxu0
    %1057 = vmatprep.mubr.f32.mxu0 0.0
    %1058 = vmatmul.mubr.f32.gmra.mrb[0].mxu0 %v66
    %v1059 = vpop.f32.mrb[0].mxu0
    %v1060 = vadd.f32 %v971, %v1059
    %v1061 = vpop.f32.mrb[0].mxu0
    %1062 = vmatprep.mubr.f32.mxu0 0.0
    %1063 = vmatmul.mubr.f32.gmra.mrb[0].mxu0 %v67
    %v1064 = vpop.f32.mrb[0].mxu0
    %v1065 = vadd.f32 %v971, %v1064
    %v1066 = vpop.f32.mrb[0].mxu0
    %1067 = vmatprep.mubr.f32.mxu0 0.0
    %1068 = vmatmul.mubr.f32.gmra.mrb[0].mxu0 %v68
    %v1069 = vpop.f32.mrb[0].mxu0
    %v1070 = vadd.f32 %v971, %v1069
    %v1071 = vpop.f32.mrb[0].mxu0
    %1072 = vmatprep.mubr.f32.mxu0 0.0
    %1073 = vmatmul.mubr.f32.gmra.mrb[0].mxu0 %v69
    %v1074 = vpop.f32.mrb[0].mxu0
    %v1075 = vadd.f32 %v971, %v1074
    %v1076 = vpop.f32.mrb[0].mxu0
    %1077 = vmatprep.mubr.f32.mxu0 0.0
    %1078 = vmatmul.mubr.f32.gmra.mrb[0].mxu0 %v70
    %v1079 = vpop.f32.mrb[0].mxu0
    %v1080 = vadd.f32 %v971, %v1079
    %v1081 = vpop.f32.mrb[0].mxu0
    %1082 = vmatprep.mubr.f32.mxu0 0.0
    %1083 = vmatmul.mubr.f32.gmra.mrb[0].mxu0 %v71
    %v1084 = vpop.f32.mrb[0].mxu0
    %v1085 = vadd.f32 %v971, %v1084
    %v1086 = vpop.f32.mrb[0].mxu0
    %1087 = vmatprep.mubr.f32.mxu0 0.0
    %1088 = vmatmul.mubr.f32.gmra.mrb[0].mxu0 %v72
    %v1089 = vpop.f32.mrb[0].mxu0
    %v1090 = vadd.f32 %v971, %v1089
    %v1091 = vpop.f32.mrb[0].mxu0
    %1092 = vmatprep.mubr.f32.mxu0 0.0
    %1093 = vmatmul.mubr.f32.gmra.mrb[0].mxu0 %v73
    %v1094 = vpop.f32.mrb[0].mxu0
    %v1095 = vadd.f32 %v971, %v1094
    %v1096 = vpop.f32.mrb[0].mxu0
    %1097 = vmatprep.mubr.f32.mxu0 0.0
    %1098 = vmatmul.mubr.f32.gmra.mrb[0].mxu0 %v74
    %v1099 = vpop.f32.mrb[0].mxu0
    %v1100 = vadd.f32 %v971, %v1099
    %v1101 = vpop.f32.mrb[0].mxu0
    %1102 = vmatprep.mubr.f32.mxu0 0.0
    %1103 = vmatmul.mubr.f32.gmra.mrb[0].mxu0 %v75
    %v1104 = vpop.f32.mrb[0].mxu0
    %v1105 = vadd.f32 %v971, %v1104
    %v1106 = vpop.f32.mrb[0].mxu0
    %1107 = vmatprep.mubr.f32.mxu0 0.0
    %1108 = vmatmul.mubr.f32.gmra.mrb[0].mxu0 %v76
    %v1109 = vpop.f32.mrb[0].mxu0
    %v1110 = vadd.f32 %v971, %v1109
    %v1111 = vpop.f32.mrb[0].mxu0
    %1112 = vmatprep.mubr.f32.mxu0 0.0
    %1113 = vmatmul.mubr.f32.gmra.mrb[0].mxu0 %v77
    %v1114 = vpop.f32.mrb[0].mxu0
    %v1115 = vadd.f32 %v971, %v1114
    %v1116 = vpop.f32.mrb[0].mxu0
    %1117 = vdwg.mxu0
    %1118 = vst [vmem:[#allocation10] sm:$0xff] %v1040
    %1119 = vst [vmem:[#allocation10 + $0x8] sm:$0xff] %v1045
    %1120 = vst [vmem:[#allocation10 + $0x10] sm:$0xff] %v1050
    %1121 = vst [vmem:[#allocation10 + $0x18] sm:$0xff] %v1055
    %1122 = vst [vmem:[#allocation10 + $0x20] sm:$0xff] %v1060
    %1123 = vst [vmem:[#allocation10 + $0x28] sm:$0xff] %v1065
    %1124 = vst [vmem:[#allocation10 + $0x30] sm:$0xff] %v1070
    %1125 = vst [vmem:[#allocation10 + $0x38] sm:$0xff] %v1075
    %1126 = vst [vmem:[#allocation10 + $0x40] sm:$0xff] %v1080
    %1127 = vst [vmem:[#allocation10 + $0x48] sm:$0xff] %v1085
    %1128 = vst [vmem:[#allocation10 + $0x50] sm:$0xff] %v1090
    %1129 = vst [vmem:[#allocation10 + $0x58] sm:$0xff] %v1095
    %1130 = vst [vmem:[#allocation10 + $0x60] sm:$0xff] %v1100
    %1131 = vst [vmem:[#allocation10 + $0x68] sm:$0xff] %v1105
    %1132 = vst [vmem:[#allocation10 + $0x70] sm:$0xff] %v1110
    %1133 = vst [vmem:[#allocation10 + $0x78] sm:$0xff] %v1115
    // Predicated region
    $region42: #{tpu_custom_call.1} parent=1 // pred_check
      _
    $region43: #{tpu_custom_call.1} parent=1 // pred_check_branch
      %1135 = sbr.rel (0) target = $region45
    $region44: #{tpu_custom_call.1} parent=1 // pred_region
      %s1137 = ssub.s32 2048, 2048
      %1138 = vsyncadd [#allocation4], %s1137
      %s1139 = sshll.u32 [#allocation7], 4
      %s1140 = int_to_ptr.vmem [resolvable:$true] %s1139
      %1145 = dma.vmem_to_hbm [thread:$0]  %s1140, 2048, %s8, [#allocation4], 128, 128, 8
    $region45: #{tpu_custom_call.1} parent=1 // pred_fallthru
      _
    // Predicated region
    $region46: #{tpu_custom_call.1} parent=1 // pred_check
      _
    $region47: #{tpu_custom_call.1} parent=1 // pred_check_branch
      %1147 = sbr.rel (0) target = $region49
    $region48: #{tpu_custom_call.1} parent=1 // pred_region
      %s1149 = ssub.s32 2048, 2048
      %1150 = vsyncadd [#allocation9], %s1149
      %s1151 = sshll.u32 [#allocation8], 4
      %s1152 = int_to_ptr.vmem [resolvable:$true] %s1151
      %1157 = dma.vmem_to_hbm [thread:$0]  %s1152, 2048, %s9, [#allocation9], 128, 128, 8
    $region49: #{tpu_custom_call.1} parent=1 // pred_fallthru
      _
    // Predicated region
    $region50: #{tpu_custom_call.1} parent=1 // pred_check
      _
    $region51: #{tpu_custom_call.1} parent=1 // pred_check_branch
      %1159 = sbr.rel (0) target = $region53
    $region52: #{tpu_custom_call.1} parent=1 // pred_region
      %s1161 = ssub.s32 2048, 2048
      %1162 = vsyncadd [#allocation9], %s1161
      %s1163 = sshll.u32 [#allocation10], 4
      %s1164 = int_to_ptr.vmem [resolvable:$true] %s1163
      %1169 = dma.vmem_to_hbm [thread:$0]  %s1164, 2048, %s10, [#allocation9], 128, 128, 8
    $region53: #{tpu_custom_call.1} parent=1 // pred_fallthru
      _
    // Predicated region
    $region54: #{tpu_custom_call.1} parent=1 // pred_check
      _
    $region55: #{tpu_custom_call.1} parent=1 // pred_check_branch
      %1171 = sbr.rel (0) target = $region57
    $region56: #{tpu_custom_call.1} parent=1 // pred_region
      %1172 = dma.done [#allocation4], 2048
    $region57: #{tpu_custom_call.1} parent=1 // pred_fallthru
      _
    // Predicated region
    $region58: #{tpu_custom_call.1} parent=1 // pred_check
      _
    $region59: #{tpu_custom_call.1} parent=1 // pred_check_branch
      %1174 = sbr.rel (0) target = $region61
    $region60: #{tpu_custom_call.1} parent=1 // pred_region
      %1175 = dma.done [#allocation9], 2048
    $region61: #{tpu_custom_call.1} parent=1 // pred_fallthru
      _
    // Predicated region
    $region62: #{tpu_custom_call.1} parent=1 // pred_check
      _
    $region63: #{tpu_custom_call.1} parent=1 // pred_check_branch
      %1177 = sbr.rel (0) target = $region65
    $region64: #{tpu_custom_call.1} parent=1 // pred_region
      %1178 = dma.done [#allocation9], 2048
    $region65: #{tpu_custom_call.1} parent=1 // pred_fallthru
      _
    %1179 = vsyncpa [#allocation3], 1
    %1180 = vsyncpa [#allocation6], 1
    %1181 = vsyncpa [#allocation4], 1
    %1182 = vsyncpa [#allocation9], 1

</llo_original>
